<compile_context>
chip_gen: v5e
topology: v5e:2x2
jax: 0.10.0
libtpu: 0.0.40
codegen_flags: <defaults>
</compile_context>

<pallas_src>
import functools
import math

import jax
import jax.numpy as jnp
from jax.experimental import pallas as pl
from jax.experimental.pallas import tpu as pltpu

LANE = 128
SUBLANE = 8
_MB = 1024 * 1024


# ------------------------------ small helpers ------------------------------ #

def _round_up(x, m):
    return ((x + m - 1) // m) * m


def _pad2(a, rows, cols):
    return jnp.pad(a, ((0, rows - a.shape[0]), (0, cols - a.shape[1])))


def _full_spec(shape):
    nd = len(shape)
    return pl.BlockSpec(shape, lambda *_: (0,) * nd)


_HW_CACHE = {}


def _vmem_capacity_bytes():
    if "cap" not in _HW_CACHE:
        cap = 64 * _MB                       # conservative fallback (v7x)
        try:
            info = pltpu.get_tpu_info()
            c = getattr(info, "vmem_capacity_bytes", None)
            if c:
                cap = int(c)
        except Exception:
            pass
        _HW_CACHE["cap"] = cap
    return _HW_CACHE["cap"]


def _is_v7x():
    if "v7x" not in _HW_CACHE:
        kind = ""
        try:
            kind = jax.devices()[0].device_kind.lower()
        except Exception:
            pass
        _HW_CACHE["v7x"] = ("v7" in kind) or ("7x" in kind)
    return _HW_CACHE["v7x"]


def _compiler_params(est_bytes, semantics=None):
    cap = _vmem_capacity_bytes()
    limit = int(min(max(est_bytes + 2 * _MB, 32 * _MB), 0.92 * cap))
    return pltpu.CompilerParams(dimension_semantics=semantics,
                                vmem_limit_bytes=limit)


def _col_tile(n):
    for t in (512, 256, 128):
        if n % t == 0:
            return t
    return n


# ----------------------------- Pallas kernels ------------------------------ #

def _dense_kernel(x_ref, w_ref, b_ref, o_ref, *, apply_relu):
    h = jnp.dot(x_ref[...], w_ref[...], preferred_element_type=jnp.float32)
    h = h + b_ref[...]
    if apply_relu:
        h = jnp.maximum(h, 0.0)
    o_ref[...] = h.astype(o_ref.dtype)


def pallas_dense(x, w_t, b, *, apply_relu, out_dtype, tm):
    """out = (relu?)(x @ w_t + b), tiled over rows and output columns."""
    Np, Fin = x.shape
    Fout = w_t.shape[1]
    tn = _col_tile(Fout)
    est = 2 * (tm * Fin * 2 + Fin * tn * 2 + tm * tn * 4 + tn * 4)
    return pl.pallas_call(
        functools.partial(_dense_kernel, apply_relu=apply_relu),
        out_shape=jax.ShapeDtypeStruct((Np, Fout), out_dtype),
        grid=(Np // tm, Fout // tn),
        in_specs=[pl.BlockSpec((tm, Fin), lambda i, j: (i, 0)),
                  pl.BlockSpec((Fin, tn), lambda i, j: (0, j)),
                  pl.BlockSpec((1, tn), lambda i, j: (0, j))],
        out_specs=pl.BlockSpec((tm, tn), lambda i, j: (i, j)),
        compiler_params=_compiler_params(est, ("parallel", "parallel")),
    )(x, w_t, b)


def _dense_proj_kernel(x_ref, w_ref, b_ref, wn_ref, o_ref):
    # relu(x @ W_in + b_in) @ W_next  — lin_in fused with first layer's X@W.
    h = jnp.dot(x_ref[...], w_ref[...], preferred_element_type=jnp.float32)
    h = jnp.maximum(h + b_ref[...], 0.0).astype(jnp.bfloat16)
    o_ref[...] = jnp.dot(h, wn_ref[...],
                         preferred_element_type=jnp.float32).astype(o_ref.dtype)


def pallas_dense_proj(x, w_t, b, w_next, *, tm):
    Np, Fin = x.shape
    H = w_t.shape[1]
    Fn = w_next.shape[1]
    est = (2 * (tm * Fin * 2 + tm * Fn * 2)
           + Fin * H * 2 + H * Fn * 2 + H * 4 + tm * H * 4)
    return pl.pallas_call(
        _dense_proj_kernel,
        out_shape=jax.ShapeDtypeStruct((Np, Fn), jnp.bfloat16),
        grid=(Np // tm,),
        in_specs=[pl.BlockSpec((tm, Fin), lambda i: (i, 0)),
                  pl.BlockSpec((Fin, H), lambda i: (0, 0)),
                  pl.BlockSpec((1, H), lambda i: (0, 0)),
                  pl.BlockSpec((H, Fn), lambda i: (0, 0))],
        out_specs=pl.BlockSpec((tm, Fn), lambda i: (i, 0)),
        compiler_params=_compiler_params(est, ("parallel",)),
    )(x, w_t, b, w_next)


def _agg_proj_kernel(a_ref, xw_ref, b_ref, wn_ref, o_ref, acc_ref):
    # acc = sum_k A[i,k] @ xw[k]; finalize: relu(acc + b) @ W_next.
    @pl.when(pl.program_id(1) == 0)
    def _():
        acc_ref[...] = jnp.zeros_like(acc_ref)

    acc_ref[...] += jnp.dot(a_ref[...], xw_ref[...],
                            preferred_element_type=jnp.float32)

    @pl.when(pl.program_id(1) == pl.num_programs(1) - 1)
    def _():
        h = jnp.maximum(acc_ref[...] + b_ref[...], 0.0).astype(jnp.bfloat16)
        o_ref[...] = jnp.dot(h, wn_ref[...],
                             preferred_element_type=jnp.float32
                             ).astype(o_ref.dtype)


def pallas_gcn_agg_proj(a_hat, xw, b, w_next, *, t):
    """out = [relu(A_hat @ xw + b)] @ w_next  (next layer's X@W fused in)."""
    Np = a_hat.shape[0]
    F = xw.shape[1]
    Fn = w_next.shape[1]
    est = (2 * (t * t * 2 + t * F * 2 + t * Fn * 2)
           + F * Fn * 2 + F * 4 + t * F * 4)
    # TODO(synk): if profiling on v6e shows exposed DMA between short k-steps,
    # add pipeline_mode=pl.Buffered(3) on the A_hat spec (cheap t*t bf16 buffer).
    return pl.pallas_call(
        _agg_proj_kernel,
        out_shape=jax.ShapeDtypeStruct((Np, Fn), jnp.bfloat16),
        grid=(Np // t, Np // t),
        in_specs=[pl.BlockSpec((t, t), lambda i, k: (i, k)),
                  pl.BlockSpec((t, F), lambda i, k: (k, 0)),
                  pl.BlockSpec((1, F), lambda i, k: (0, 0)),
                  pl.BlockSpec((F, Fn), lambda i, k: (0, 0))],
        out_specs=pl.BlockSpec((t, Fn), lambda i, k: (i, 0)),
        scratch_shapes=[pltpu.VMEM((t, F), jnp.float32)],
        compiler_params=_compiler_params(est, ("parallel", "arbitrary")),
    )(a_hat, xw, b, w_next)


def _agg_final_kernel(a_ref, xw_ref, b_ref, wo_ref, bo_ref, *rest,
                      write_latent):
    if write_latent:
        logits_ref, latent_ref, acc_ref = rest
    else:
        logits_ref, acc_ref = rest
        latent_ref = None

    @pl.when(pl.program_id(1) == 0)
    def _():
        acc_ref[...] = jnp.zeros_like(acc_ref)

    acc_ref[...] += jnp.dot(a_ref[...], xw_ref[...],
                            preferred_element_type=jnp.float32)

    @pl.when(pl.program_id(1) == pl.num_programs(1) - 1)
    def _():
        h = jnp.maximum(acc_ref[...] + b_ref[...], 0.0)
        if write_latent:
            latent_ref[...] = h.astype(latent_ref.dtype)
        out = jnp.dot(h.astype(jnp.bfloat16), wo_ref[...],
                      preferred_element_type=jnp.float32) + bo_ref[...]
        logits_ref[...] = out.astype(logits_ref.dtype)


def pallas_gcn_agg_final(a_hat, xw, b, w_out_t, b_out, *, t, return_latent):
    """Last GCN layer fused with lin_out: logits (+ optional latent)."""
    Np = a_hat.shape[0]
    F = xw.shape[1]
    O = w_out_t.shape[1]
    est = (2 * (t * t * 2 + t * F * 2 + t * O * 4
                + (t * F * 4 if return_latent else 0))
           + F * O * 2 + F * 4 + O * 4 + t * F * 4)
    out_shape = jax.ShapeDtypeStruct((Np, O), jnp.float32)
    out_spec = pl.BlockSpec((t, O), lambda i, k: (i, 0))
    if return_latent:
        out_shape = (out_shape, jax.ShapeDtypeStruct((Np, F), jnp.float32))
        out_spec = (out_spec, pl.BlockSpec((t, F), lambda i, k: (i, 0)))
    return pl.pallas_call(
        functools.partial(_agg_final_kernel, write_latent=return_latent),
        out_shape=out_shape,
        grid=(Np // t, Np // t),
        in_specs=[pl.BlockSpec((t, t), lambda i, k: (i, k)),
                  pl.BlockSpec((t, F), lambda i, k: (k, 0)),
                  pl.BlockSpec((1, F), lambda i, k: (0, 0)),
                  pl.BlockSpec((F, O), lambda i, k: (0, 0)),
                  pl.BlockSpec((1, O), lambda i, k: (0, 0))],
        out_specs=out_spec,
        scratch_shapes=[pltpu.VMEM((t, F), jnp.float32)],
        compiler_params=_compiler_params(est, ("parallel", "arbitrary")),
    )(a_hat, xw, b, w_out_t, b_out)


def _fused_forward_kernel(a_ref, x_ref, w_in_ref, b_in_ref, w_g_ref, b_g_ref,
                          w_out_ref, b_out_ref, *out_refs,
                          num_layers, write_latent):
    logits_ref = out_refs[0]
    latent_ref = out_refs[1] if write_latent else None

    h = jnp.dot(x_ref[...], w_in_ref[...], preferred_element_type=jnp.float32)
    h = jnp.maximum(h + b_in_ref[...], 0.0).astype(jnp.bfloat16)

    # h carried as a live bf16 value across layers (no scratch store/reload);
    # num_layers is small, so the static unroll is fine.
    for l in range(num_layers):
        xw = jnp.dot(h, w_g_ref[l], preferred_element_type=jnp.float32)
        agg = jnp.dot(a_ref[...], xw.astype(jnp.bfloat16),
                      preferred_element_type=jnp.float32)
        h = jnp.maximum(agg + b_g_ref[l], 0.0).astype(jnp.bfloat16)

    if write_latent:
        latent_ref[...] = h.astype(latent_ref.dtype)
    out = jnp.dot(h, w_out_ref[...], preferred_element_type=jnp.float32)
    logits_ref[...] = (out + b_out_ref[...]).astype(logits_ref.dtype)


def pallas_fused_forward(a_hat, x, w_in, b_in, w_g, b_g, w_out, b_out,
                         *, num_layers, return_latent, est_bytes):
    Np = x.shape[0]
    H_p = w_in.shape[1]
    O_p = w_out.shape[1]
    out_shape = jax.ShapeDtypeStruct((Np, O_p), jnp.float32)
    out_specs = _full_spec((Np, O_p))
    if return_latent:
        out_shape = (out_shape, jax.ShapeDtypeStruct((Np, H_p), jnp.float32))
        out_specs = (out_specs, _full_spec((Np, H_p)))
    return pl.pallas_call(
        functools.partial(_fused_forward_kernel, num_layers=num_layers,
                          write_latent=return_latent),
        out_shape=out_shape,
        in_specs=[_full_spec(a_hat.shape), _full_spec(x.shape),
                  _full_spec(w_in.shape), _full_spec(b_in.shape),
                  _full_spec(w_g.shape), _full_spec(b_g.shape),
                  _full_spec(w_out.shape), _full_spec(b_out.shape)],
        out_specs=out_specs,
        compiler_params=_compiler_params(est_bytes),
    )(a_hat, x, w_in, b_in, w_g, b_g, w_out, b_out)


# --------------------------- sizing heuristics ------------------------------ #

def _fused_vmem_need(Np, Fin_p, H_p, O_p, L, write_latent):
    bf, f4 = 2, 4
    Lg = max(L, 1)
    ins = (Np * Np * bf + Np * Fin_p * bf + Fin_p * H_p * bf + H_p * f4
           + Lg * H_p * H_p * bf + Lg * H_p * f4 + H_p * O_p * bf + O_p * f4)
    outs = Np * O_p * f4 + (Np * H_p * f4 if write_latent else 0)
    live = 3 * Np * H_p * f4              # in-flight f32 temporaries
    return ins + outs + live


def _agg_tile_vmem(t, Fin_p, H_p, O_p):
    fn = max(H_p, O_p)
    agg = (2 * (t * t * 2 + t * H_p * 2 + t * fn * 4)
           + H_p * fn * 2 + t * H_p * 4)
    dense = (2 * (t * Fin_p * 2 + t * H_p * 2)
             + Fin_p * H_p * 2 + H_p * H_p * 2 + t * H_p * 4)
    return max(agg, dense)


def _choose_row_tile(N, Fin_p, H_p, O_p):
    # Prefer 512 (≈85% of HBM roofline for mem-bound tiles), never pad a small
    # graph past its next 128-multiple, and stay inside the VMEM budget.
    budget = int(0.8 * _vmem_capacity_bytes())
    n128 = _round_up(max(N, SUBLANE), LANE)
    for t in (512, 384, 256, 128):
        if t > max(n128, 128):
            continue
        if _agg_tile_vmem(t, Fin_p, H_p, O_p) <= budget:
            return t
    # TODO(synk): tile the feature axis of the aggregation too if even t=128
    # overflows the budget for very large hidden sizes.
    return 128


# ------------------------------- JAX glue ---------------------------------- #

def normalized_adjacency(edge_index, num_nodes):
    """Dense D^{-1/2}(A+I)D^{-1/2}; self-loops added only where missing
    (mirrors PyG gcn_norm / add_remaining_self_loops)."""
    src = edge_index[0]
    dst = edge_index[1]
    a = jnp.zeros((num_nodes, num_nodes), jnp.float32).at[dst, src].add(1.0)
    diag = jnp.diagonal(a)
    a = a + jnp.diag(jnp.where(diag > 0, 0.0, 1.0))
    deg = a.sum(axis=1)                    # per-destination degree (row = dst)
    dinv = jnp.where(deg > 0, jax.lax.rsqrt(deg), 0.0)
    return a * dinv[:, None] * dinv[None, :]


def init_gcn_params(key, in_channels, hidden_channels, out_channels,
                    num_layers, sigma):
    """Deterministic init mirroring InitGCN.reset_parameters shapes."""
    params = {}
    k = key
    k, k1, k2 = jax.random.split(k, 3)
    bound = 1.0 / math.sqrt(in_channels)
    params["lin_in_w"] = jax.random.uniform(
        k1, (hidden_channels, in_channels), jnp.float32, -bound, bound)
    params["lin_in_b"] = jax.random.uniform(
        k2, (hidden_channels,), jnp.float32, -bound, bound)
    std = sigma / math.sqrt(hidden_channels)
    gcn_w, gcn_b = [], []
    for _ in range(num_layers):
        k, k1 = jax.random.split(k)
        gcn_w.append(std * jax.random.normal(
            k1, (hidden_channels, hidden_channels), jnp.float32))
        gcn_b.append(jnp.zeros((hidden_channels,), jnp.float32))
    params["gcn_w"] = gcn_w
    params["gcn_b"] = gcn_b
    k, k1, k2 = jax.random.split(k, 3)
    bound = 1.0 / math.sqrt(hidden_channels)
    params["lin_out_w"] = jax.random.uniform(
        k1, (out_channels, hidden_channels), jnp.float32, -bound, bound)
    params["lin_out_b"] = jax.random.uniform(
        k2, (out_channels,), jnp.float32, -bound, bound)
    return params


def init_gcn_forward(params, x, edge_index, return_latent=False,
                     force_tiled=False):
    """Pallas-backed forward of InitGCN (activation = ReLU)."""
    N, Fin = x.shape
    H = params["lin_in_w"].shape[0]
    O = params["lin_out_w"].shape[0]
    L = len(params["gcn_w"])

    # features padded to 128 only (aggregation is HBM-bound; wider H_p would
    # just double the h stream); node axis padded per chosen path/tile below.
    Fin_p = _round_up(Fin, LANE)
    H_p = _round_up(H, LANE)
    O_p = _round_up(O, LANE)

    vmem_cap = _vmem_capacity_bytes()
    # Fused single-launch path: no per-layer launches, no h / A_hat HBM round
    # trips.  On v7x shrink its budget so the megacore-shardable tiled path
    # (row axis "parallel") is preferred sooner — the grid-less fused kernel
    # would otherwise use only one of the two TensorCores.
    fused_budget = int(0.45 * vmem_cap)
    if _is_v7x():
        fused_budget = min(fused_budget, 16 * _MB)

    Np_f = _round_up(max(N, SUBLANE), LANE)
    fused_need = _fused_vmem_need(Np_f, Fin_p, H_p, O_p, L, return_latent)
    use_fused = (not force_tiled) and fused_need <= fused_budget

    if use_fused:
        Np = Np_f
        t = None
    else:
        t = _choose_row_tile(N, Fin_p, H_p, O_p)
        Np = _round_up(max(N, SUBLANE), t)

    # dense normalized adjacency, padded + bf16 (pad rows/cols are zero)
    a_hat = normalized_adjacency(edge_index, N)
    a_hat_p = _pad2(a_hat, Np, Np).astype(jnp.bfloat16)
    # TODO(synk): on v7x cast a_hat_p to float8_e4m3 to halve the dominant
    # HBM stream of the aggregation (validate accuracy first).

    x_p = _pad2(x.astype(jnp.float32), Np, Fin_p).astype(jnp.bfloat16)
    w_in_t = _pad2(params["lin_in_w"].T, Fin_p, H_p).astype(jnp.bfloat16)
    b_in = jnp.pad(params["lin_in_b"], (0, H_p - H))[None, :].astype(jnp.float32)

    gcn_w_t = [_pad2(w.T, H_p, H_p).astype(jnp.bfloat16)
               for w in params["gcn_w"]]
    gcn_b = [jnp.pad(b, (0, H_p - H))[None, :].astype(jnp.float32)
             for b in params["gcn_b"]]

    w_out_t = _pad2(params["lin_out_w"].T, H_p, O_p).astype(jnp.bfloat16)
    b_out = jnp.pad(params["lin_out_b"], (0, O_p - O))[None, :].astype(jnp.float32)

    latent_p = None
    if use_fused:
        if L > 0:
            w_g = jnp.stack(gcn_w_t)                        # [L, H_p, H_p]
            b_g = jnp.stack(gcn_b)                          # [L, 1, H_p]
        else:
            w_g = jnp.zeros((1, H_p, H_p), jnp.bfloat16)    # unused dummy
            b_g = jnp.zeros((1, 1, H_p), jnp.float32)
        res = pallas_fused_forward(a_hat_p, x_p, w_in_t, b_in, w_g, b_g,
                                   w_out_t, b_out, num_layers=L,
                                   return_latent=return_latent,
                                   est_bytes=fused_need)
        if return_latent:
            logits_p, latent_p = res
        else:
            logits_p = res
    else:
        if L == 0:
            h = pallas_dense(x_p, w_in_t, b_in, apply_relu=True,
                             out_dtype=jnp.bfloat16, tm=t)
            if return_latent:
                latent_p = h.astype(jnp.float32)
            logits_p = pallas_dense(h, w_out_t, b_out, apply_relu=False,
                                    out_dtype=jnp.float32, tm=t)
        else:
            # lin_in fused with the first layer's X@W -> xw_1 directly
            xw = pallas_dense_proj(x_p, w_in_t, b_in, gcn_w_t[0], tm=t)
            # layers 1..L-1: aggregation with the NEXT layer's X@W fused into
            # the finalize epilogue (no per-layer h/xw HBM round trip)
            for l in range(L - 1):
                xw = pallas_gcn_agg_proj(a_hat_p, xw, gcn_b[l],
                                         gcn_w_t[l + 1], t=t)
            # last layer: aggregation fused with lin_out (+ optional latent)
            res = pallas_gcn_agg_final(a_hat_p, xw, gcn_b[L - 1], w_out_t,
                                       b_out, t=t, return_latent=return_latent)
            if return_latent:
                logits_p, latent_p = res
            else:
                logits_p = res

    logits = logits_p[:N, :O]
    if return_latent:
        return logits, latent_p[:N, :H]
    return logits


def reference_forward(params, x, edge_index):
    """Pure-JAX f32 reference (mirrors the PyTorch module)."""
    a = normalized_adjacency(edge_index, x.shape[0])
    h = jnp.maximum(x @ params["lin_in_w"].T + params["lin_in_b"], 0.0)
    for w, b in zip(params["gcn_w"], params["gcn_b"]):
        h = jnp.maximum(a @ (h @ w.T) + b, 0.0)
    logits = h @ params["lin_out_w"].T + params["lin_out_b"]
    return logits, h


# --------------------------------- main ------------------------------------ #

if __name__ == "__main__":
    N = 16              # number of graph nodes
    IN_C = 8
    HID_C = 32
    OUT_C = 4
    NUM_LAYERS = 2
    SIGMA = 1.0

    key = jax.random.PRNGKey(0)
    kx, kp = jax.random.split(key)

    x = jax.random.normal(kx, (N, IN_C), jnp.float32)

    # deterministic bidirectional ring graph: edges (i, i+1) and (i+1, i)
    src = jnp.concatenate([jnp.arange(N), (jnp.arange(N) + 1) % N]).astype(jnp.int32)
    dst = jnp.concatenate([(jnp.arange(N) + 1) % N, jnp.arange(N)]).astype(jnp.int32)
    edge_index = jnp.stack([src, dst], axis=0)   # [2, E], E = 32

    params = init_gcn_params(kp, IN_C, HID_C, OUT_C, NUM_LAYERS, SIGMA)

    # fused single-kernel path (auto-selected at these small sizes)
    logits_f, latent_f = init_gcn_forward(params, x, edge_index,
                                          return_latent=True)
    logits_f = jax.block_until_ready(logits_f)
    latent_f = jax.block_until_ready(latent_f)

    # logits-only fused path (latent writeback skipped)
    logits_only = jax.block_until_ready(init_gcn_forward(params, x, edge_index))

    # scalable tiled path (fused dense+proj, (rows, k)-tiled aggregation with
    # the next layer's X@W / lin_out fused into the finalize epilogue)
    logits_t, latent_t = init_gcn_forward(params, x, edge_index,
                                          return_latent=True, force_tiled=True)
    logits_t = jax.block_until_ready(logits_t)
    latent_t = jax.block_until_ready(latent_t)

    assert logits_f.shape == (N, OUT_C)
    assert latent_f.shape == (N, HID_C)
    assert bool(jnp.all(jnp.isfinite(logits_f)))
    assert bool(jnp.all(jnp.isfinite(logits_t)))

    # all Pallas paths agree with each other and (loosely, bf16) with f32 ref
    assert bool(jnp.allclose(logits_f, logits_only, atol=2e-2, rtol=2e-2))
    assert bool(jnp.allclose(logits_f, logits_t, atol=2e-2, rtol=2e-2))
    logits_r, latent_r = reference_forward(params, x, edge_index)
    assert bool(jnp.allclose(logits_f, logits_r, atol=1e-1, rtol=1e-1))
    assert bool(jnp.allclose(latent_f, latent_r, atol=1e-1, rtol=1e-1))
    assert bool(jnp.allclose(latent_t, latent_r, atol=1e-1, rtol=1e-1))

    print("KERNEL_OK")
</pallas_src>

<mosaic_0001>
module attributes {stable_mosaic.version = 11 : i64} {
  func.func @_fused_forward_kernel(%arg0: memref<128x128xbf16, #tpu.memory_space<vmem>>, %arg1: memref<128x128xbf16, #tpu.memory_space<vmem>>, %arg2: memref<128x128xbf16, #tpu.memory_space<vmem>>, %arg3: memref<1x128xf32, #tpu.memory_space<vmem>>, %arg4: memref<2x128x128xbf16, #tpu.memory_space<vmem>>, %arg5: memref<2x1x128xf32, #tpu.memory_space<vmem>>, %arg6: memref<128x128xbf16, #tpu.memory_space<vmem>>, %arg7: memref<1x128xf32, #tpu.memory_space<vmem>>, %arg8: memref<128x128xf32, #tpu.memory_space<vmem>>, %arg9: memref<128x128xf32, #tpu.memory_space<vmem>>) attributes {dimension_semantics = [], scalar_prefetch = 0 : i64, scratch_operands = 0 : i64, tpu.core_type = #tpu.core_type<tc>} {
    %c0 = arith.constant 0 : index
    %c0_0 = arith.constant 0 : index
    %0 = vector.load %arg1[%c0, %c0_0] : memref<128x128xbf16, #tpu.memory_space<vmem>>, vector<128x128xbf16>
    %c0_1 = arith.constant 0 : index
    %c0_2 = arith.constant 0 : index
    %1 = vector.load %arg2[%c0_1, %c0_2] : memref<128x128xbf16, #tpu.memory_space<vmem>>, vector<128x128xbf16>
    %cst = arith.constant dense<0.000000e+00> : vector<128x128xf32>
    %2 = tpu.matmul %0, %1, %cst {dimension_numbers = #tpu.dot_dimension_numbers<[1], [0], [0], [1], [0, 0, 1, 1], [], []>} : vector<128x128xbf16>, vector<128x128xbf16>, vector<128x128xf32> -> vector<128x128xf32>
    %c0_3 = arith.constant 0 : index
    %c0_4 = arith.constant 0 : index
    %3 = vector.load %arg3[%c0_3, %c0_4] : memref<1x128xf32, #tpu.memory_space<vmem>>, vector<1x128xf32>
    %4 = vector.broadcast %3 : vector<1x128xf32> to vector<128x128xf32>
    %5 = arith.addf %2, %4 : vector<128x128xf32>
    %cst_5 = arith.constant 0.000000e+00 : f32
    %6 = vector.broadcast %cst_5 : f32 to vector<128x128xf32>
    %7 = arith.maximumf %5, %6 : vector<128x128xf32>
    %8 = arith.truncf %7 : vector<128x128xf32> to vector<128x128xbf16>
    %c0_6 = arith.constant 0 : index
    %c0_7 = arith.constant 0 : index
    %c0_8 = arith.constant 0 : index
    %9 = vector.load %arg4[%c0_6, %c0_7, %c0_8] : memref<2x128x128xbf16, #tpu.memory_space<vmem>>, vector<1x128x128xbf16>
    %10 = vector.shape_cast %9 : vector<1x128x128xbf16> to vector<128x128xbf16>
    %cst_9 = arith.constant dense<0.000000e+00> : vector<128x128xf32>
    %11 = tpu.matmul %8, %10, %cst_9 {dimension_numbers = #tpu.dot_dimension_numbers<[1], [0], [0], [1], [0, 0, 1, 1], [], []>} : vector<128x128xbf16>, vector<128x128xbf16>, vector<128x128xf32> -> vector<128x128xf32>
    %c0_10 = arith.constant 0 : index
    %c0_11 = arith.constant 0 : index
    %12 = vector.load %arg0[%c0_10, %c0_11] : memref<128x128xbf16, #tpu.memory_space<vmem>>, vector<128x128xbf16>
    %13 = arith.truncf %11 : vector<128x128xf32> to vector<128x128xbf16>
    %cst_12 = arith.constant dense<0.000000e+00> : vector<128x128xf32>
    %14 = tpu.matmul %12, %13, %cst_12 {dimension_numbers = #tpu.dot_dimension_numbers<[1], [0], [0], [1], [0, 0, 1, 1], [], []>} : vector<128x128xbf16>, vector<128x128xbf16>, vector<128x128xf32> -> vector<128x128xf32>
    %c0_13 = arith.constant 0 : index
    %c0_14 = arith.constant 0 : index
    %c0_15 = arith.constant 0 : index
    %15 = vector.load %arg5[%c0_13, %c0_14, %c0_15] : memref<2x1x128xf32, #tpu.memory_space<vmem>>, vector<1x1x128xf32>
    %16 = vector.shape_cast %15 : vector<1x1x128xf32> to vector<1x128xf32>
    %17 = vector.broadcast %16 : vector<1x128xf32> to vector<128x128xf32>
    %18 = arith.addf %14, %17 : vector<128x128xf32>
    %cst_16 = arith.constant 0.000000e+00 : f32
    %19 = vector.broadcast %cst_16 : f32 to vector<128x128xf32>
    %20 = arith.maximumf %18, %19 : vector<128x128xf32>
    %21 = arith.truncf %20 : vector<128x128xf32> to vector<128x128xbf16>
    %c1 = arith.constant 1 : index
    %c0_17 = arith.constant 0 : index
    %c0_18 = arith.constant 0 : index
    %22 = vector.load %arg4[%c1, %c0_17, %c0_18] : memref<2x128x128xbf16, #tpu.memory_space<vmem>>, vector<1x128x128xbf16>
    %23 = vector.shape_cast %22 : vector<1x128x128xbf16> to vector<128x128xbf16>
    %cst_19 = arith.constant dense<0.000000e+00> : vector<128x128xf32>
    %24 = tpu.matmul %21, %23, %cst_19 {dimension_numbers = #tpu.dot_dimension_numbers<[1], [0], [0], [1], [0, 0, 1, 1], [], []>} : vector<128x128xbf16>, vector<128x128xbf16>, vector<128x128xf32> -> vector<128x128xf32>
    %c0_20 = arith.constant 0 : index
    %c0_21 = arith.constant 0 : index
    %25 = vector.load %arg0[%c0_20, %c0_21] : memref<128x128xbf16, #tpu.memory_space<vmem>>, vector<128x128xbf16>
    %26 = arith.truncf %24 : vector<128x128xf32> to vector<128x128xbf16>
    %cst_22 = arith.constant dense<0.000000e+00> : vector<128x128xf32>
    %27 = tpu.matmul %25, %26, %cst_22 {dimension_numbers = #tpu.dot_dimension_numbers<[1], [0], [0], [1], [0, 0, 1, 1], [], []>} : vector<128x128xbf16>, vector<128x128xbf16>, vector<128x128xf32> -> vector<128x128xf32>
    %c1_23 = arith.constant 1 : index
    %c0_24 = arith.constant 0 : index
    %c0_25 = arith.constant 0 : index
    %28 = vector.load %arg5[%c1_23, %c0_24, %c0_25] : memref<2x1x128xf32, #tpu.memory_space<vmem>>, vector<1x1x128xf32>
    %29 = vector.shape_cast %28 : vector<1x1x128xf32> to vector<1x128xf32>
    %30 = vector.broadcast %29 : vector<1x128xf32> to vector<128x128xf32>
    %31 = arith.addf %27, %30 : vector<128x128xf32>
    %cst_26 = arith.constant 0.000000e+00 : f32
    %32 = vector.broadcast %cst_26 : f32 to vector<128x128xf32>
    %33 = arith.maximumf %31, %32 : vector<128x128xf32>
    %34 = arith.truncf %33 : vector<128x128xf32> to vector<128x128xbf16>
    %35 = arith.extf %34 : vector<128x128xbf16> to vector<128x128xf32>
    %c0_27 = arith.constant 0 : index
    %c0_28 = arith.constant 0 : index
    %36 = vector.load %arg9[%c0_27, %c0_28] : memref<128x128xf32, #tpu.memory_space<vmem>>, vector<128x128xf32>
    tpu.vector_store %arg9[%c0_27, %c0_28], %35 {strides = array<i32>} : memref<128x128xf32, #tpu.memory_space<vmem>>, vector<128x128xf32>,
    %c0_29 = arith.constant 0 : index
    %c0_30 = arith.constant 0 : index
    %37 = vector.load %arg6[%c0_29, %c0_30] : memref<128x128xbf16, #tpu.memory_space<vmem>>, vector<128x128xbf16>
    %cst_31 = arith.constant dense<0.000000e+00> : vector<128x128xf32>
    %38 = tpu.matmul %34, %37, %cst_31 {dimension_numbers = #tpu.dot_dimension_numbers<[1], [0], [0], [1], [0, 0, 1, 1], [], []>} : vector<128x128xbf16>, vector<128x128xbf16>, vector<128x128xf32> -> vector<128x128xf32>
    %c0_32 = arith.constant 0 : index
    %c0_33 = arith.constant 0 : index
    %39 = vector.load %arg7[%c0_32, %c0_33] : memref<1x128xf32, #tpu.memory_space<vmem>>, vector<1x128xf32>
    %40 = vector.broadcast %39 : vector<1x128xf32> to vector<128x128xf32>
    %41 = arith.addf %38, %40 : vector<128x128xf32>
    %c0_34 = arith.constant 0 : index
    %c0_35 = arith.constant 0 : index
    %42 = vector.load %arg8[%c0_34, %c0_35] : memref<128x128xf32, #tpu.memory_space<vmem>>, vector<128x128xf32>
    tpu.vector_store %arg8[%c0_34, %c0_35], %41 {strides = array<i32>} : memref<128x128xf32, #tpu.memory_space<vmem>>, vector<128x128xf32>,
    return
  }
}

</mosaic_0001>

<llo_original>
// kernel: tpu_custom_call.1
$region0: #{tpu_custom_call.1}
  #allocation0 [shape = 'u32[]', space=smem, size = 0x4, offset = 0x4, fixed_abs, tag = 'smem constant byte address 0x4 - core index']
  #allocation1 [shape = 'u32[72,128]{1,0:T(1,128)}', space=vmem, size = 0x9000, scoped, tag = 'internal scratch']
  %s0 = inlined_call_operand.hbm [shape: bf16[128,128], index: 0, kind: input, shape index: {}]
  %s1 = inlined_call_operand.hbm [shape: bf16[128,128], index: 1, kind: input, shape index: {}]
  %s2 = inlined_call_operand.hbm [shape: bf16[128,128], index: 2, kind: input, shape index: {}]
  %s3 = inlined_call_operand.vmem [shape: f32[1,128], index: 3, kind: input, shape index: {}]
  %s4 = inlined_call_operand.hbm [shape: bf16[2,128,128], index: 4, kind: input, shape index: {}]
  %s5 = inlined_call_operand.vmem [shape: f32[2,1,128], index: 5, kind: input, shape index: {}]
  %s6 = inlined_call_operand.hbm [shape: bf16[128,128], index: 6, kind: input, shape index: {}]
  %s7 = inlined_call_operand.vmem [shape: f32[1,128], index: 7, kind: input, shape index: {}]
  %s8 = inlined_call_operand.hbm [shape: f32[128,128], index: 8, kind: output, shape index: {0}]
  %s9 = inlined_call_operand.hbm [shape: f32[128,128], index: 9, kind: output, shape index: {1}]
  %10 = xla_tuple %s8, %s9
  %s11 = sld [smem:[#allocation0]]
  $region70: #{tpu_custom_call.1} parent=0
    _
  %s13 = ssub.s32 1, %s11
  %s14 = scalar_select 0, %s13, %s11
  $region1: #{tpu_custom_call.1} parent=0
    #allocation2 [shape = 'u8[32768]{0}', space=vmem, size = 0x8000, scoped, tag = 'input window, operand 0, single buffered']
    #allocation3 [shape = 's32[1]{0}', space=sflag, size = 0x4, scoped, tag = 'scoped memory for tpu_custom_call.1']
    #allocation4 [shape = 's32[1]{0}', space=sflag, size = 0x4, scoped, tag = 'scoped memory for tpu_custom_call.1']
    #allocation5 [shape = 'u8[32768]{0}', space=vmem, size = 0x8000, scoped, tag = 'input window, operand 1, single buffered']
    #allocation6 [shape = 's32[1]{0}', space=sflag, size = 0x4, scoped, tag = 'scoped memory for tpu_custom_call.1']
    #allocation7 [shape = 'u8[32768]{0}', space=vmem, size = 0x8000, scoped, tag = 'input window, operand 2, single buffered']
    #allocation8 [shape = 'u8[65536]{0}', space=vmem, size = 0x10000, scoped, tag = 'input window, operand 4, single buffered']
    #allocation9 [shape = 's32[1]{0}', space=sflag, size = 0x4, scoped, tag = 'scoped memory for tpu_custom_call.1']
    #allocation10 [shape = 'u8[32768]{0}', space=vmem, size = 0x8000, scoped, tag = 'input window, operand 6, single buffered']
    #allocation11 [shape = 'u8[65536]{0}', space=vmem, size = 0x10000, scoped, tag = 'output window, operand 0, single buffered']
    #allocation12 [shape = 'u8[65536]{0}', space=vmem, size = 0x10000, scoped, tag = 'output window, operand 1, single buffered']
    #allocation13 [shape = 's32[1]{0}', space=sflag, size = 0x4, scoped, tag = 'scoped memory for tpu_custom_call.1']
    %15 = vsyncpa [#allocation3], 0
    %16 = vsyncpa [#allocation6], 0
    %17 = vsyncpa [#allocation9], 0
    %18 = vsyncpa [#allocation4], 0
    %19 = vsyncpa [#allocation13], 0
    // Predicated region
    $region2: #{tpu_custom_call.1} parent=1 // pred_check
      _
    $region3: #{tpu_custom_call.1} parent=1 // pred_check_branch
      %21 = sbr.rel (0) target = $region5
    $region4: #{tpu_custom_call.1} parent=1 // pred_region
      %23 = vsyncadd [#allocation3], 0
      %s24 = sshll.u32 %s0, 4
      %s25 = int_to_ptr.hbm [resolvable:$true] %s24
      %s26 = sshll.u32 [#allocation2], 4
      %s27 = int_to_ptr.vmem [resolvable:$true] %s26
      %32 = dma.hbm_to_vmem [thread:$0]  %s25, 1024, %s27, [#allocation3], 64, 64, 4
    $region5: #{tpu_custom_call.1} parent=1 // pred_fallthru
      _
    // Predicated region
    $region6: #{tpu_custom_call.1} parent=1 // pred_check
      _
    $region7: #{tpu_custom_call.1} parent=1 // pred_check_branch
      %34 = sbr.rel (0) target = $region9
    $region8: #{tpu_custom_call.1} parent=1 // pred_region
      %36 = vsyncadd [#allocation6], 0
      %s37 = sshll.u32 %s1, 4
      %s38 = int_to_ptr.hbm [resolvable:$true] %s37
      %s39 = sshll.u32 [#allocation5], 4
      %s40 = int_to_ptr.vmem [resolvable:$true] %s39
      %45 = dma.hbm_to_vmem [thread:$0]  %s38, 1024, %s40, [#allocation6], 64, 64, 4
    $region9: #{tpu_custom_call.1} parent=1 // pred_fallthru
      _
    // Predicated region
    $region10: #{tpu_custom_call.1} parent=1 // pred_check
      _
    $region11: #{tpu_custom_call.1} parent=1 // pred_check_branch
      %47 = sbr.rel (0) target = $region13
    $region12: #{tpu_custom_call.1} parent=1 // pred_region
      %49 = vsyncadd [#allocation6], 0
      %s50 = sshll.u32 %s2, 4
      %s51 = int_to_ptr.hbm [resolvable:$true] %s50
      %s52 = sshll.u32 [#allocation7], 4
      %s53 = int_to_ptr.vmem [resolvable:$true] %s52
      %58 = dma.hbm_to_vmem [thread:$0]  %s51, 1024, %s53, [#allocation6], 64, 64, 4
    $region13: #{tpu_custom_call.1} parent=1 // pred_fallthru
      _
    // Predicated region
    $region14: #{tpu_custom_call.1} parent=1 // pred_check
      _
    $region15: #{tpu_custom_call.1} parent=1 // pred_check_branch
      %60 = sbr.rel (0) target = $region17
    $region16: #{tpu_custom_call.1} parent=1 // pred_region
      _
    $region17: #{tpu_custom_call.1} parent=1 // pred_fallthru
      _
    // Predicated region
    $region18: #{tpu_custom_call.1} parent=1 // pred_check
      _
    $region19: #{tpu_custom_call.1} parent=1 // pred_check_branch
      %62 = sbr.rel (0) target = $region21
    $region20: #{tpu_custom_call.1} parent=1 // pred_region
      %64 = vsyncadd [#allocation9], 0
      %s65 = sshll.u32 %s4, 4
      %s66 = int_to_ptr.hbm [resolvable:$true] %s65
      %s67 = sshll.u32 [#allocation8], 4
      %s68 = int_to_ptr.vmem [resolvable:$true] %s67
      %73 = dma.hbm_to_vmem [thread:$0]  %s66, 2048, %s68, [#allocation9], 64, 64, 4
    $region21: #{tpu_custom_call.1} parent=1 // pred_fallthru
      _
    // Predicated region
    $region22: #{tpu_custom_call.1} parent=1 // pred_check
      _
    $region23: #{tpu_custom_call.1} parent=1 // pred_check_branch
      %75 = sbr.rel (0) target = $region25
    $region24: #{tpu_custom_call.1} parent=1 // pred_region
      _
    $region25: #{tpu_custom_call.1} parent=1 // pred_fallthru
      _
    // Predicated region
    $region26: #{tpu_custom_call.1} parent=1 // pred_check
      _
    $region27: #{tpu_custom_call.1} parent=1 // pred_check_branch
      %77 = sbr.rel (0) target = $region29
    $region28: #{tpu_custom_call.1} parent=1 // pred_region
      %79 = vsyncadd [#allocation9], 0
      %s80 = sshll.u32 %s6, 4
      %s81 = int_to_ptr.hbm [resolvable:$true] %s80
      %s82 = sshll.u32 [#allocation10], 4
      %s83 = int_to_ptr.vmem [resolvable:$true] %s82
      %88 = dma.hbm_to_vmem [thread:$0]  %s81, 1024, %s83, [#allocation9], 64, 64, 4
    $region29: #{tpu_custom_call.1} parent=1 // pred_fallthru
      _
    // Predicated region
    $region30: #{tpu_custom_call.1} parent=1 // pred_check
      _
    $region31: #{tpu_custom_call.1} parent=1 // pred_check_branch
      %90 = sbr.rel (0) target = $region33
    $region32: #{tpu_custom_call.1} parent=1 // pred_region
      _
    $region33: #{tpu_custom_call.1} parent=1 // pred_fallthru
      _
    // Predicated region
    $region34: #{tpu_custom_call.1} parent=1 // pred_check
      _
    $region35: #{tpu_custom_call.1} parent=1 // pred_check_branch
      %92 = sbr.rel (0) target = $region37
    $region36: #{tpu_custom_call.1} parent=1 // pred_region
      %94 = dma.done [#allocation3], 1024
    $region37: #{tpu_custom_call.1} parent=1 // pred_fallthru
      _
    // Predicated region
    $region38: #{tpu_custom_call.1} parent=1 // pred_check
      _
    $region39: #{tpu_custom_call.1} parent=1 // pred_check_branch
      %96 = sbr.rel (0) target = $region41
    $region40: #{tpu_custom_call.1} parent=1 // pred_region
      %98 = dma.done [#allocation6], 1024
    $region41: #{tpu_custom_call.1} parent=1 // pred_fallthru
      _
    // Predicated region
    $region42: #{tpu_custom_call.1} parent=1 // pred_check
      _
    $region43: #{tpu_custom_call.1} parent=1 // pred_check_branch
      %100 = sbr.rel (0) target = $region45
    $region44: #{tpu_custom_call.1} parent=1 // pred_region
      %102 = dma.done [#allocation6], 1024
    $region45: #{tpu_custom_call.1} parent=1 // pred_fallthru
      _
    // Predicated region
    $region46: #{tpu_custom_call.1} parent=1 // pred_check
      _
    $region47: #{tpu_custom_call.1} parent=1 // pred_check_branch
      %104 = sbr.rel (0) target = $region49
    $region48: #{tpu_custom_call.1} parent=1 // pred_region
      %106 = dma.done [#allocation9], 2048
    $region49: #{tpu_custom_call.1} parent=1 // pred_fallthru
      _
    // Predicated region
    $region50: #{tpu_custom_call.1} parent=1 // pred_check
      _
    $region51: #{tpu_custom_call.1} parent=1 // pred_check_branch
      %108 = sbr.rel (0) target = $region53
    $region52: #{tpu_custom_call.1} parent=1 // pred_region
      %110 = dma.done [#allocation9], 1024
    $region53: #{tpu_custom_call.1} parent=1 // pred_fallthru
      _
    %v111 = vld [vmem:[#allocation5] sm:$0xf]
    %v112 = vld [vmem:[#allocation5 + $0x4] sm:$0xf]
    %v113 = vld [vmem:[#allocation5 + $0x8] sm:$0xf]
    %v114 = vld [vmem:[#allocation5 + $0xc] sm:$0xf]
    %v115 = vld [vmem:[#allocation5 + $0x10] sm:$0xf]
    %v116 = vld [vmem:[#allocation5 + $0x14] sm:$0xf]
    %v117 = vld [vmem:[#allocation5 + $0x18] sm:$0xf]
    %v118 = vld [vmem:[#allocation5 + $0x1c] sm:$0xf]
    %v119 = vld [vmem:[#allocation5 + $0x20] sm:$0xf]
    %v120 = vld [vmem:[#allocation5 + $0x24] sm:$0xf]
    %v121 = vld [vmem:[#allocation5 + $0x28] sm:$0xf]
    %v122 = vld [vmem:[#allocation5 + $0x2c] sm:$0xf]
    %v123 = vld [vmem:[#allocation5 + $0x30] sm:$0xf]
    %v124 = vld [vmem:[#allocation5 + $0x34] sm:$0xf]
    %v125 = vld [vmem:[#allocation5 + $0x38] sm:$0xf]
    %v126 = vld [vmem:[#allocation5 + $0x3c] sm:$0xf]
    %v127 = vld [vmem:[#allocation7] sm:$0xf]
    %v128 = vld [vmem:[#allocation7 + $0x4] sm:$0xf]
    %v129 = vld [vmem:[#allocation7 + $0x8] sm:$0xf]
    %v130 = vld [vmem:[#allocation7 + $0xc] sm:$0xf]
    %v131 = vld [vmem:[#allocation7 + $0x10] sm:$0xf]
    %v132 = vld [vmem:[#allocation7 + $0x14] sm:$0xf]
    %v133 = vld [vmem:[#allocation7 + $0x18] sm:$0xf]
    %v134 = vld [vmem:[#allocation7 + $0x1c] sm:$0xf]
    %v135 = vld [vmem:[#allocation7 + $0x20] sm:$0xf]
    %v136 = vld [vmem:[#allocation7 + $0x24] sm:$0xf]
    %v137 = vld [vmem:[#allocation7 + $0x28] sm:$0xf]
    %v138 = vld [vmem:[#allocation7 + $0x2c] sm:$0xf]
    %v139 = vld [vmem:[#allocation7 + $0x30] sm:$0xf]
    %v140 = vld [vmem:[#allocation7 + $0x34] sm:$0xf]
    %v141 = vld [vmem:[#allocation7 + $0x38] sm:$0xf]
    %v142 = vld [vmem:[#allocation7 + $0x3c] sm:$0xf]
    %v143 = vld [vmem:[%s3] sm:$0x1]
    %v145 = vperm.slane %v143, 0
    %v163 = vunpack.c.l.b16 %v111
    %v164 = vunpack.c.l.b16 %v112
    %v165 = vunpack.c.l.b16 %v113
    %v166 = vunpack.c.l.b16 %v114
    %v167 = vunpack.c.l.b16 %v115
    %v168 = vunpack.c.l.b16 %v116
    %v169 = vunpack.c.l.b16 %v117
    %v170 = vunpack.c.l.b16 %v118
    %v171 = vunpack.c.l.b16 %v119
    %v172 = vunpack.c.l.b16 %v120
    %v173 = vunpack.c.l.b16 %v121
    %v174 = vunpack.c.l.b16 %v122
    %v175 = vunpack.c.l.b16 %v123
    %v176 = vunpack.c.l.b16 %v124
    %v177 = vunpack.c.l.b16 %v125
    %v178 = vunpack.c.l.b16 %v126
    %v179 = vpack.c.b16 %v164, %v163
    %v180 = vpack.c.b16 %v166, %v165
    %v181 = vpack.c.b16 %v168, %v167
    %v182 = vpack.c.b16 %v170, %v169
    %v183 = vpack.c.b16 %v172, %v171
    %v184 = vpack.c.b16 %v174, %v173
    %v185 = vpack.c.b16 %v176, %v175
    %v186 = vpack.c.b16 %v178, %v177
    %v211 = vunpack.c.l.b16 %v127
    %v212 = vunpack.c.l.b16 %v128
    %v213 = vunpack.c.l.b16 %v129
    %v214 = vunpack.c.l.b16 %v130
    %v215 = vunpack.c.l.b16 %v131
    %v216 = vunpack.c.l.b16 %v132
    %v217 = vunpack.c.l.b16 %v133
    %v218 = vunpack.c.l.b16 %v134
    %v219 = vunpack.c.l.b16 %v135
    %v220 = vunpack.c.l.b16 %v136
    %v221 = vunpack.c.l.b16 %v137
    %v222 = vunpack.c.l.b16 %v138
    %v223 = vunpack.c.l.b16 %v139
    %v224 = vunpack.c.l.b16 %v140
    %v225 = vunpack.c.l.b16 %v141
    %v226 = vunpack.c.l.b16 %v142
    %v227 = vpack.c.b16 %v212, %v211
    %v228 = vpack.c.b16 %v214, %v213
    %v229 = vpack.c.b16 %v216, %v215
    %v230 = vpack.c.b16 %v218, %v217
    %v231 = vpack.c.b16 %v220, %v219
    %v232 = vpack.c.b16 %v222, %v221
    %v233 = vpack.c.b16 %v224, %v223
    %v234 = vpack.c.b16 %v226, %v225
    %243 = vmatpush.bf16.msra.mxu0 %v234
    %244 = vmatpush.bf16.msra.mxu0 %v233
    %245 = vmatpush.bf16.msra.mxu0 %v232
    %246 = vmatpush.bf16.msra.mxu0 %v231
    %247 = vmatpush.bf16.msra.mxu0 %v230
    %248 = vmatpush.bf16.msra.mxu0 %v229
    %249 = vmatpush.bf16.msra.mxu0 %v228
    %250 = vmatpush.bf16.msra.mxu0 %v227
    %251 = vmatmul.bf16.gmra.mxu0 %v179
    %v252 = vpop.f32.mrf.mxu0
    %v253 = vadd.f32 %v145, %v252
    %v254 = vpop.f32.mrf.mxu0
    %v255 = vadd.f32 %v145, %v254
    %256 = vmatmul.bf16.gmra.mxu0 %v180
    %v257 = vpop.f32.mrf.mxu0
    %v258 = vadd.f32 %v145, %v257
    %v259 = vpop.f32.mrf.mxu0
    %v260 = vadd.f32 %v145, %v259
    %261 = vmatmul.bf16.gmra.mxu0 %v181
    %v262 = vpop.f32.mrf.mxu0
    %v263 = vadd.f32 %v145, %v262
    %v264 = vpop.f32.mrf.mxu0
    %v265 = vadd.f32 %v145, %v264
    %266 = vmatmul.bf16.gmra.mxu0 %v182
    %v267 = vpop.f32.mrf.mxu0
    %v268 = vadd.f32 %v145, %v267
    %v269 = vpop.f32.mrf.mxu0
    %v270 = vadd.f32 %v145, %v269
    %271 = vmatmul.bf16.gmra.mxu0 %v183
    %v272 = vpop.f32.mrf.mxu0
    %v273 = vadd.f32 %v145, %v272
    %v274 = vpop.f32.mrf.mxu0
    %v275 = vadd.f32 %v145, %v274
    %276 = vmatmul.bf16.gmra.mxu0 %v184
    %v277 = vpop.f32.mrf.mxu0
    %v278 = vadd.f32 %v145, %v277
    %v279 = vpop.f32.mrf.mxu0
    %v280 = vadd.f32 %v145, %v279
    %281 = vmatmul.bf16.gmra.mxu0 %v185
    %v282 = vpop.f32.mrf.mxu0
    %v283 = vadd.f32 %v145, %v282
    %v284 = vpop.f32.mrf.mxu0
    %v285 = vadd.f32 %v145, %v284
    %286 = vmatmul.bf16.gmra.mxu0 %v186
    %v287 = vpop.f32.mrf.mxu0
    %v288 = vadd.f32 %v145, %v287
    %v289 = vpop.f32.mrf.mxu0
    %v290 = vadd.f32 %v145, %v289
    %291 = vdwg.mxu0
    %v292 = vmax.f32 %v253, 0.0
    %v293 = vmax.f32 %v255, 0.0
    %v294 = vmax.f32 %v258, 0.0
    %v295 = vmax.f32 %v260, 0.0
    %v296 = vmax.f32 %v263, 0.0
    %v297 = vmax.f32 %v265, 0.0
    %v298 = vmax.f32 %v268, 0.0
    %v299 = vmax.f32 %v270, 0.0
    %v300 = vmax.f32 %v273, 0.0
    %v301 = vmax.f32 %v275, 0.0
    %v302 = vmax.f32 %v278, 0.0
    %v303 = vmax.f32 %v280, 0.0
    %v304 = vmax.f32 %v283, 0.0
    %v305 = vmax.f32 %v285, 0.0
    %v306 = vmax.f32 %v288, 0.0
    %v307 = vmax.f32 %v290, 0.0
    %v308 = vpack.c.bf16 %v293, %v292
    %v309 = vpack.c.bf16 %v295, %v294
    %v310 = vpack.c.bf16 %v297, %v296
    %v311 = vpack.c.bf16 %v299, %v298
    %v312 = vpack.c.bf16 %v301, %v300
    %v313 = vpack.c.bf16 %v303, %v302
    %v314 = vpack.c.bf16 %v305, %v304
    %v315 = vpack.c.bf16 %v307, %v306
    %v316 = vld [vmem:[#allocation8] sm:$0xf]
    %v317 = vld [vmem:[#allocation8 + $0x4] sm:$0xf]
    %v318 = vld [vmem:[#allocation8 + $0x8] sm:$0xf]
    %v319 = vld [vmem:[#allocation8 + $0xc] sm:$0xf]
    %v320 = vld [vmem:[#allocation8 + $0x10] sm:$0xf]
    %v321 = vld [vmem:[#allocation8 + $0x14] sm:$0xf]
    %v322 = vld [vmem:[#allocation8 + $0x18] sm:$0xf]
    %v323 = vld [vmem:[#allocation8 + $0x1c] sm:$0xf]
    %v324 = vld [vmem:[#allocation8 + $0x20] sm:$0xf]
    %v325 = vld [vmem:[#allocation8 + $0x24] sm:$0xf]
    %v326 = vld [vmem:[#allocation8 + $0x28] sm:$0xf]
    %v327 = vld [vmem:[#allocation8 + $0x2c] sm:$0xf]
    %v328 = vld [vmem:[#allocation8 + $0x30] sm:$0xf]
    %v329 = vld [vmem:[#allocation8 + $0x34] sm:$0xf]
    %v330 = vld [vmem:[#allocation8 + $0x38] sm:$0xf]
    %v331 = vld [vmem:[#allocation8 + $0x3c] sm:$0xf]
    %v348 = vunpack.c.l.b16 %v316
    %v349 = vunpack.c.l.b16 %v317
    %v350 = vunpack.c.l.b16 %v318
    %v351 = vunpack.c.l.b16 %v319
    %v352 = vunpack.c.l.b16 %v320
    %v353 = vunpack.c.l.b16 %v321
    %v354 = vunpack.c.l.b16 %v322
    %v355 = vunpack.c.l.b16 %v323
    %v356 = vunpack.c.l.b16 %v324
    %v357 = vunpack.c.l.b16 %v325
    %v358 = vunpack.c.l.b16 %v326
    %v359 = vunpack.c.l.b16 %v327
    %v360 = vunpack.c.l.b16 %v328
    %v361 = vunpack.c.l.b16 %v329
    %v362 = vunpack.c.l.b16 %v330
    %v363 = vunpack.c.l.b16 %v331
    %v364 = vpack.c.b16 %v349, %v348
    %v365 = vpack.c.b16 %v351, %v350
    %v366 = vpack.c.b16 %v353, %v352
    %v367 = vpack.c.b16 %v355, %v354
    %v368 = vpack.c.b16 %v357, %v356
    %v369 = vpack.c.b16 %v359, %v358
    %v370 = vpack.c.b16 %v361, %v360
    %v371 = vpack.c.b16 %v363, %v362
    %380 = vmatpush.bf16.msra.mxu0 %v371
    %381 = vmatpush.bf16.msra.mxu0 %v370
    %382 = vmatpush.bf16.msra.mxu0 %v369
    %383 = vmatpush.bf16.msra.mxu0 %v368
    %384 = vmatpush.bf16.msra.mxu0 %v367
    %385 = vmatpush.bf16.msra.mxu0 %v366
    %386 = vmatpush.bf16.msra.mxu0 %v365
    %387 = vmatpush.bf16.msra.mxu0 %v364
    %388 = vmatmul.bf16.gmra.mxu0 %v308
    %v389 = vpop.f32.mrf.mxu0
    %v390 = vadd.f32 0.0, %v389
    %v391 = vpop.f32.mrf.mxu0
    %v392 = vadd.f32 0.0, %v391
    %393 = vmatmul.bf16.gmra.mxu0 %v309
    %v394 = vpop.f32.mrf.mxu0
    %v395 = vadd.f32 0.0, %v394
    %v396 = vpop.f32.mrf.mxu0
    %v397 = vadd.f32 0.0, %v396
    %398 = vmatmul.bf16.gmra.mxu0 %v310
    %v399 = vpop.f32.mrf.mxu0
    %v400 = vadd.f32 0.0, %v399
    %v401 = vpop.f32.mrf.mxu0
    %v402 = vadd.f32 0.0, %v401
    %403 = vmatmul.bf16.gmra.mxu0 %v311
    %v404 = vpop.f32.mrf.mxu0
    %v405 = vadd.f32 0.0, %v404
    %v406 = vpop.f32.mrf.mxu0
    %v407 = vadd.f32 0.0, %v406
    %408 = vmatmul.bf16.gmra.mxu0 %v312
    %v409 = vpop.f32.mrf.mxu0
    %v410 = vadd.f32 0.0, %v409
    %v411 = vpop.f32.mrf.mxu0
    %v412 = vadd.f32 0.0, %v411
    %413 = vmatmul.bf16.gmra.mxu0 %v313
    %v414 = vpop.f32.mrf.mxu0
    %v415 = vadd.f32 0.0, %v414
    %v416 = vpop.f32.mrf.mxu0
    %v417 = vadd.f32 0.0, %v416
    %418 = vmatmul.bf16.gmra.mxu0 %v314
    %v419 = vpop.f32.mrf.mxu0
    %v420 = vadd.f32 0.0, %v419
    %v421 = vpop.f32.mrf.mxu0
    %v422 = vadd.f32 0.0, %v421
    %423 = vmatmul.bf16.gmra.mxu0 %v315
    %v424 = vpop.f32.mrf.mxu0
    %v425 = vadd.f32 0.0, %v424
    %v426 = vpop.f32.mrf.mxu0
    %v427 = vadd.f32 0.0, %v426
    %428 = vdwg.mxu0
    %v429 = vld [vmem:[#allocation2] sm:$0xf]
    %v430 = vld [vmem:[#allocation2 + $0x4] sm:$0xf]
    %v431 = vld [vmem:[#allocation2 + $0x8] sm:$0xf]
    %v432 = vld [vmem:[#allocation2 + $0xc] sm:$0xf]
    %v433 = vld [vmem:[#allocation2 + $0x10] sm:$0xf]
    %v434 = vld [vmem:[#allocation2 + $0x14] sm:$0xf]
    %v435 = vld [vmem:[#allocation2 + $0x18] sm:$0xf]
    %v436 = vld [vmem:[#allocation2 + $0x1c] sm:$0xf]
    %v437 = vld [vmem:[#allocation2 + $0x20] sm:$0xf]
    %v438 = vld [vmem:[#allocation2 + $0x24] sm:$0xf]
    %v439 = vld [vmem:[#allocation2 + $0x28] sm:$0xf]
    %v440 = vld [vmem:[#allocation2 + $0x2c] sm:$0xf]
    %v441 = vld [vmem:[#allocation2 + $0x30] sm:$0xf]
    %v442 = vld [vmem:[#allocation2 + $0x34] sm:$0xf]
    %v443 = vld [vmem:[#allocation2 + $0x38] sm:$0xf]
    %v444 = vld [vmem:[#allocation2 + $0x3c] sm:$0xf]
    %v445 = vpack.c.bf16 %v392, %v390
    %v446 = vpack.c.bf16 %v397, %v395
    %v447 = vpack.c.bf16 %v402, %v400
    %v448 = vpack.c.bf16 %v407, %v405
    %v449 = vpack.c.bf16 %v412, %v410
    %v450 = vpack.c.bf16 %v417, %v415
    %v451 = vpack.c.bf16 %v422, %v420
    %v452 = vpack.c.bf16 %v427, %v425
    %v453 = vld [vmem:[%s5] sm:$0x1]
    %v455 = vperm.slane %v453, 0
    %v473 = vunpack.c.l.b16 %v429
    %v474 = vunpack.c.l.b16 %v430
    %v475 = vunpack.c.l.b16 %v431
    %v476 = vunpack.c.l.b16 %v432
    %v477 = vunpack.c.l.b16 %v433
    %v478 = vunpack.c.l.b16 %v434
    %v479 = vunpack.c.l.b16 %v435
    %v480 = vunpack.c.l.b16 %v436
    %v481 = vunpack.c.l.b16 %v437
    %v482 = vunpack.c.l.b16 %v438
    %v483 = vunpack.c.l.b16 %v439
    %v484 = vunpack.c.l.b16 %v440
    %v485 = vunpack.c.l.b16 %v441
    %v486 = vunpack.c.l.b16 %v442
    %v487 = vunpack.c.l.b16 %v443
    %v488 = vunpack.c.l.b16 %v444
    %v489 = vpack.c.b16 %v474, %v473
    %v490 = vpack.c.b16 %v476, %v475
    %v491 = vpack.c.b16 %v478, %v477
    %v492 = vpack.c.b16 %v480, %v479
    %v493 = vpack.c.b16 %v482, %v481
    %v494 = vpack.c.b16 %v484, %v483
    %v495 = vpack.c.b16 %v486, %v485
    %v496 = vpack.c.b16 %v488, %v487
    %505 = vmatpush.bf16.msra.mxu0 %v452
    %506 = vmatpush.bf16.msra.mxu0 %v451
    %507 = vmatpush.bf16.msra.mxu0 %v450
    %508 = vmatpush.bf16.msra.mxu0 %v449
    %509 = vmatpush.bf16.msra.mxu0 %v448
    %510 = vmatpush.bf16.msra.mxu0 %v447
    %511 = vmatpush.bf16.msra.mxu0 %v446
    %512 = vmatpush.bf16.msra.mxu0 %v445
    %513 = vmatmul.bf16.gmra.mxu0 %v489
    %v514 = vpop.f32.mrf.mxu0
    %v515 = vadd.f32 %v455, %v514
    %v516 = vpop.f32.mrf.mxu0
    %v517 = vadd.f32 %v455, %v516
    %518 = vmatmul.bf16.gmra.mxu0 %v490
    %v519 = vpop.f32.mrf.mxu0
    %v520 = vadd.f32 %v455, %v519
    %v521 = vpop.f32.mrf.mxu0
    %v522 = vadd.f32 %v455, %v521
    %523 = vmatmul.bf16.gmra.mxu0 %v491
    %v524 = vpop.f32.mrf.mxu0
    %v525 = vadd.f32 %v455, %v524
    %v526 = vpop.f32.mrf.mxu0
    %v527 = vadd.f32 %v455, %v526
    %528 = vmatmul.bf16.gmra.mxu0 %v492
    %v529 = vpop.f32.mrf.mxu0
    %v530 = vadd.f32 %v455, %v529
    %v531 = vpop.f32.mrf.mxu0
    %v532 = vadd.f32 %v455, %v531
    %533 = vmatmul.bf16.gmra.mxu0 %v493
    %v534 = vpop.f32.mrf.mxu0
    %v535 = vadd.f32 %v455, %v534
    %v536 = vpop.f32.mrf.mxu0
    %v537 = vadd.f32 %v455, %v536
    %538 = vmatmul.bf16.gmra.mxu0 %v494
    %v539 = vpop.f32.mrf.mxu0
    %v540 = vadd.f32 %v455, %v539
    %v541 = vpop.f32.mrf.mxu0
    %v542 = vadd.f32 %v455, %v541
    %543 = vmatmul.bf16.gmra.mxu0 %v495
    %v544 = vpop.f32.mrf.mxu0
    %v545 = vadd.f32 %v455, %v544
    %v546 = vpop.f32.mrf.mxu0
    %v547 = vadd.f32 %v455, %v546
    %548 = vmatmul.bf16.gmra.mxu0 %v496
    %v549 = vpop.f32.mrf.mxu0
    %v550 = vadd.f32 %v455, %v549
    %v551 = vpop.f32.mrf.mxu0
    %v552 = vadd.f32 %v455, %v551
    %553 = vdwg.mxu0
    %v554 = vmax.f32 %v515, 0.0
    %v555 = vmax.f32 %v517, 0.0
    %v556 = vmax.f32 %v520, 0.0
    %v557 = vmax.f32 %v522, 0.0
    %v558 = vmax.f32 %v525, 0.0
    %v559 = vmax.f32 %v527, 0.0
    %v560 = vmax.f32 %v530, 0.0
    %v561 = vmax.f32 %v532, 0.0
    %v562 = vmax.f32 %v535, 0.0
    %v563 = vmax.f32 %v537, 0.0
    %v564 = vmax.f32 %v540, 0.0
    %v565 = vmax.f32 %v542, 0.0
    %v566 = vmax.f32 %v545, 0.0
    %v567 = vmax.f32 %v547, 0.0
    %v568 = vmax.f32 %v550, 0.0
    %v569 = vmax.f32 %v552, 0.0
    %v570 = vpack.c.bf16 %v555, %v554
    %v571 = vpack.c.bf16 %v557, %v556
    %v572 = vpack.c.bf16 %v559, %v558
    %v573 = vpack.c.bf16 %v561, %v560
    %v574 = vpack.c.bf16 %v563, %v562
    %v575 = vpack.c.bf16 %v565, %v564
    %v576 = vpack.c.bf16 %v567, %v566
    %v577 = vpack.c.bf16 %v569, %v568
    %s578 = scalar_lea.vmem [#allocation8], 64
    %v579 = vld [vmem:[%s578] sm:$0xf]
    %v580 = vld [vmem:[%s578 + $0x4] sm:$0xf]
    %v581 = vld [vmem:[%s578 + $0x8] sm:$0xf]
    %v582 = vld [vmem:[%s578 + $0xc] sm:$0xf]
    %v583 = vld [vmem:[%s578 + $0x10] sm:$0xf]
    %v584 = vld [vmem:[%s578 + $0x14] sm:$0xf]
    %v585 = vld [vmem:[%s578 + $0x18] sm:$0xf]
    %v586 = vld [vmem:[%s578 + $0x1c] sm:$0xf]
    %v587 = vld [vmem:[%s578 + $0x20] sm:$0xf]
    %v588 = vld [vmem:[%s578 + $0x24] sm:$0xf]
    %v589 = vld [vmem:[%s578 + $0x28] sm:$0xf]
    %v590 = vld [vmem:[%s578 + $0x2c] sm:$0xf]
    %v591 = vld [vmem:[%s578 + $0x30] sm:$0xf]
    %v592 = vld [vmem:[%s578 + $0x34] sm:$0xf]
    %v593 = vld [vmem:[%s578 + $0x38] sm:$0xf]
    %v594 = vld [vmem:[%s578 + $0x3c] sm:$0xf]
    %v611 = vunpack.c.l.b16 %v579
    %v612 = vunpack.c.l.b16 %v580
    %v613 = vunpack.c.l.b16 %v581
    %v614 = vunpack.c.l.b16 %v582
    %v615 = vunpack.c.l.b16 %v583
    %v616 = vunpack.c.l.b16 %v584
    %v617 = vunpack.c.l.b16 %v585
    %v618 = vunpack.c.l.b16 %v586
    %v619 = vunpack.c.l.b16 %v587
    %v620 = vunpack.c.l.b16 %v588
    %v621 = vunpack.c.l.b16 %v589
    %v622 = vunpack.c.l.b16 %v590
    %v623 = vunpack.c.l.b16 %v591
    %v624 = vunpack.c.l.b16 %v592
    %v625 = vunpack.c.l.b16 %v593
    %v626 = vunpack.c.l.b16 %v594
    %v627 = vpack.c.b16 %v612, %v611
    %v628 = vpack.c.b16 %v614, %v613
    %v629 = vpack.c.b16 %v616, %v615
    %v630 = vpack.c.b16 %v618, %v617
    %v631 = vpack.c.b16 %v620, %v619
    %v632 = vpack.c.b16 %v622, %v621
    %v633 = vpack.c.b16 %v624, %v623
    %v634 = vpack.c.b16 %v626, %v625
    %643 = vmatpush.bf16.msra.mxu0 %v634
    %644 = vmatpush.bf16.msra.mxu0 %v633
    %645 = vmatpush.bf16.msra.mxu0 %v632
    %646 = vmatpush.bf16.msra.mxu0 %v631
    %647 = vmatpush.bf16.msra.mxu0 %v630
    %648 = vmatpush.bf16.msra.mxu0 %v629
    %649 = vmatpush.bf16.msra.mxu0 %v628
    %650 = vmatpush.bf16.msra.mxu0 %v627
    %651 = vmatmul.bf16.gmra.mxu0 %v570
    %v652 = vpop.f32.mrf.mxu0
    %v653 = vadd.f32 0.0, %v652
    %v654 = vpop.f32.mrf.mxu0
    %v655 = vadd.f32 0.0, %v654
    %656 = vmatmul.bf16.gmra.mxu0 %v571
    %v657 = vpop.f32.mrf.mxu0
    %v658 = vadd.f32 0.0, %v657
    %v659 = vpop.f32.mrf.mxu0
    %v660 = vadd.f32 0.0, %v659
    %661 = vmatmul.bf16.gmra.mxu0 %v572
    %v662 = vpop.f32.mrf.mxu0
    %v663 = vadd.f32 0.0, %v662
    %v664 = vpop.f32.mrf.mxu0
    %v665 = vadd.f32 0.0, %v664
    %666 = vmatmul.bf16.gmra.mxu0 %v573
    %v667 = vpop.f32.mrf.mxu0
    %v668 = vadd.f32 0.0, %v667
    %v669 = vpop.f32.mrf.mxu0
    %v670 = vadd.f32 0.0, %v669
    %671 = vmatmul.bf16.gmra.mxu0 %v574
    %v672 = vpop.f32.mrf.mxu0
    %v673 = vadd.f32 0.0, %v672
    %v674 = vpop.f32.mrf.mxu0
    %v675 = vadd.f32 0.0, %v674
    %676 = vmatmul.bf16.gmra.mxu0 %v575
    %v677 = vpop.f32.mrf.mxu0
    %v678 = vadd.f32 0.0, %v677
    %v679 = vpop.f32.mrf.mxu0
    %v680 = vadd.f32 0.0, %v679
    %681 = vmatmul.bf16.gmra.mxu0 %v576
    %v682 = vpop.f32.mrf.mxu0
    %v683 = vadd.f32 0.0, %v682
    %v684 = vpop.f32.mrf.mxu0
    %v685 = vadd.f32 0.0, %v684
    %686 = vmatmul.bf16.gmra.mxu0 %v577
    %v687 = vpop.f32.mrf.mxu0
    %v688 = vadd.f32 0.0, %v687
    %v689 = vpop.f32.mrf.mxu0
    %v690 = vadd.f32 0.0, %v689
    %691 = vdwg.mxu0
    %v692 = vpack.c.bf16 %v655, %v653
    %v693 = vpack.c.bf16 %v660, %v658
    %v694 = vpack.c.bf16 %v665, %v663
    %v695 = vpack.c.bf16 %v670, %v668
    %v696 = vpack.c.bf16 %v675, %v673
    %v697 = vpack.c.bf16 %v680, %v678
    %v698 = vpack.c.bf16 %v685, %v683
    %v699 = vpack.c.bf16 %v690, %v688
    %s700 = scalar_lea.vmem %s5, 1
    %v701 = vld [vmem:[%s700] sm:$0x1]
    %v703 = vperm.slane %v701, 0
    %705 = vmatpush.bf16.msra.mxu0 %v699
    %706 = vmatpush.bf16.msra.mxu0 %v698
    %707 = vmatpush.bf16.msra.mxu0 %v697
    %708 = vmatpush.bf16.msra.mxu0 %v696
    %709 = vmatpush.bf16.msra.mxu0 %v695
    %710 = vmatpush.bf16.msra.mxu0 %v694
    %711 = vmatpush.bf16.msra.mxu0 %v693
    %712 = vmatpush.bf16.msra.mxu0 %v692
    %713 = vmatmul.bf16.gmra.mxu0 %v489
    %v714 = vpop.f32.mrf.mxu0
    %v715 = vadd.f32 %v703, %v714
    %v716 = vpop.f32.mrf.mxu0
    %v717 = vadd.f32 %v703, %v716
    %718 = vmatmul.bf16.gmra.mxu0 %v490
    %v719 = vpop.f32.mrf.mxu0
    %v720 = vadd.f32 %v703, %v719
    %v721 = vpop.f32.mrf.mxu0
    %v722 = vadd.f32 %v703, %v721
    %723 = vmatmul.bf16.gmra.mxu0 %v491
    %v724 = vpop.f32.mrf.mxu0
    %v725 = vadd.f32 %v703, %v724
    %v726 = vpop.f32.mrf.mxu0
    %v727 = vadd.f32 %v703, %v726
    %728 = vmatmul.bf16.gmra.mxu0 %v492
    %v729 = vpop.f32.mrf.mxu0
    %v730 = vadd.f32 %v703, %v729
    %v731 = vpop.f32.mrf.mxu0
    %v732 = vadd.f32 %v703, %v731
    %733 = vmatmul.bf16.gmra.mxu0 %v493
    %v734 = vpop.f32.mrf.mxu0
    %v735 = vadd.f32 %v703, %v734
    %v736 = vpop.f32.mrf.mxu0
    %v737 = vadd.f32 %v703, %v736
    %738 = vmatmul.bf16.gmra.mxu0 %v494
    %v739 = vpop.f32.mrf.mxu0
    %v740 = vadd.f32 %v703, %v739
    %v741 = vpop.f32.mrf.mxu0
    %v742 = vadd.f32 %v703, %v741
    %743 = vmatmul.bf16.gmra.mxu0 %v495
    %v744 = vpop.f32.mrf.mxu0
    %v745 = vadd.f32 %v703, %v744
    %v746 = vpop.f32.mrf.mxu0
    %v747 = vadd.f32 %v703, %v746
    %748 = vmatmul.bf16.gmra.mxu0 %v496
    %v749 = vpop.f32.mrf.mxu0
    %v750 = vadd.f32 %v703, %v749
    %v751 = vpop.f32.mrf.mxu0
    %v752 = vadd.f32 %v703, %v751
    %753 = vdwg.mxu0
    %v754 = vmax.f32 %v715, 0.0
    %v755 = vmax.f32 %v717, 0.0
    %v756 = vmax.f32 %v720, 0.0
    %v757 = vmax.f32 %v722, 0.0
    %v758 = vmax.f32 %v725, 0.0
    %v759 = vmax.f32 %v727, 0.0
    %v760 = vmax.f32 %v730, 0.0
    %v761 = vmax.f32 %v732, 0.0
    %v762 = vmax.f32 %v735, 0.0
    %v763 = vmax.f32 %v737, 0.0
    %v764 = vmax.f32 %v740, 0.0
    %v765 = vmax.f32 %v742, 0.0
    %v766 = vmax.f32 %v745, 0.0
    %v767 = vmax.f32 %v747, 0.0
    %v768 = vmax.f32 %v750, 0.0
    %v769 = vmax.f32 %v752, 0.0
    %v770 = vpack.c.bf16 %v754, %v754
    %v771 = vpack.c.bf16 %v755, %v755
    %v772 = vpack.c.bf16 %v756, %v756
    %v773 = vpack.c.bf16 %v757, %v757
    %v774 = vpack.c.bf16 %v758, %v758
    %v775 = vpack.c.bf16 %v759, %v759
    %v776 = vpack.c.bf16 %v760, %v760
    %v777 = vpack.c.bf16 %v761, %v761
    %v778 = vpack.c.bf16 %v762, %v762
    %v779 = vpack.c.bf16 %v763, %v763
    %v780 = vpack.c.bf16 %v764, %v764
    %v781 = vpack.c.bf16 %v765, %v765
    %v782 = vpack.c.bf16 %v766, %v766
    %v783 = vpack.c.bf16 %v767, %v767
    %v784 = vpack.c.bf16 %v768, %v768
    %v785 = vpack.c.bf16 %v769, %v769
    %v786 = vunpack.c.l.bf16 %v770
    %v787 = vunpack.c.l.bf16 %v771
    %v788 = vunpack.c.l.bf16 %v772
    %v789 = vunpack.c.l.bf16 %v773
    %v790 = vunpack.c.l.bf16 %v774
    %v791 = vunpack.c.l.bf16 %v775
    %v792 = vunpack.c.l.bf16 %v776
    %v793 = vunpack.c.l.bf16 %v777
    %v794 = vunpack.c.l.bf16 %v778
    %v795 = vunpack.c.l.bf16 %v779
    %v796 = vunpack.c.l.bf16 %v780
    %v797 = vunpack.c.l.bf16 %v781
    %v798 = vunpack.c.l.bf16 %v782
    %v799 = vunpack.c.l.bf16 %v783
    %v800 = vunpack.c.l.bf16 %v784
    %v801 = vunpack.c.l.bf16 %v785
    %802 = vst [vmem:[#allocation12] sm:$0xff] %v786
    %803 = vst [vmem:[#allocation12 + $0x8] sm:$0xff] %v787
    %804 = vst [vmem:[#allocation12 + $0x10] sm:$0xff] %v788
    %805 = vst [vmem:[#allocation12 + $0x18] sm:$0xff] %v789
    %806 = vst [vmem:[#allocation12 + $0x20] sm:$0xff] %v790
    %807 = vst [vmem:[#allocation12 + $0x28] sm:$0xff] %v791
    %808 = vst [vmem:[#allocation12 + $0x30] sm:$0xff] %v792
    %809 = vst [vmem:[#allocation12 + $0x38] sm:$0xff] %v793
    %810 = vst [vmem:[#allocation12 + $0x40] sm:$0xff] %v794
    %811 = vst [vmem:[#allocation12 + $0x48] sm:$0xff] %v795
    %812 = vst [vmem:[#allocation12 + $0x50] sm:$0xff] %v796
    %813 = vst [vmem:[#allocation12 + $0x58] sm:$0xff] %v797
    %814 = vst [vmem:[#allocation12 + $0x60] sm:$0xff] %v798
    %815 = vst [vmem:[#allocation12 + $0x68] sm:$0xff] %v799
    %816 = vst [vmem:[#allocation12 + $0x70] sm:$0xff] %v800
    %817 = vst [vmem:[#allocation12 + $0x78] sm:$0xff] %v801
    %v818 = vld [vmem:[#allocation10] sm:$0xf]
    %v819 = vld [vmem:[#allocation10 + $0x4] sm:$0xf]
    %v820 = vld [vmem:[#allocation10 + $0x8] sm:$0xf]
    %v821 = vld [vmem:[#allocation10 + $0xc] sm:$0xf]
    %v822 = vld [vmem:[#allocation10 + $0x10] sm:$0xf]
    %v823 = vld [vmem:[#allocation10 + $0x14] sm:$0xf]
    %v824 = vld [vmem:[#allocation10 + $0x18] sm:$0xf]
    %v825 = vld [vmem:[#allocation10 + $0x1c] sm:$0xf]
    %v826 = vld [vmem:[#allocation10 + $0x20] sm:$0xf]
    %v827 = vld [vmem:[#allocation10 + $0x24] sm:$0xf]
    %v828 = vld [vmem:[#allocation10 + $0x28] sm:$0xf]
    %v829 = vld [vmem:[#allocation10 + $0x2c] sm:$0xf]
    %v830 = vld [vmem:[#allocation10 + $0x30] sm:$0xf]
    %v831 = vld [vmem:[#allocation10 + $0x34] sm:$0xf]
    %v832 = vld [vmem:[#allocation10 + $0x38] sm:$0xf]
    %v833 = vld [vmem:[#allocation10 + $0x3c] sm:$0xf]
    %v834 = vld [vmem:[%s7] sm:$0x1]
    %v836 = vperm.slane %v834, 0
    %v854 = vunpack.c.l.b16 %v770
    %v855 = vunpack.c.l.b16 %v771
    %v856 = vunpack.c.l.b16 %v772
    %v857 = vunpack.c.l.b16 %v773
    %v858 = vunpack.c.l.b16 %v774
    %v859 = vunpack.c.l.b16 %v775
    %v860 = vunpack.c.l.b16 %v776
    %v861 = vunpack.c.l.b16 %v777
    %v862 = vunpack.c.l.b16 %v778
    %v863 = vunpack.c.l.b16 %v779
    %v864 = vunpack.c.l.b16 %v780
    %v865 = vunpack.c.l.b16 %v781
    %v866 = vunpack.c.l.b16 %v782
    %v867 = vunpack.c.l.b16 %v783
    %v868 = vunpack.c.l.b16 %v784
    %v869 = vunpack.c.l.b16 %v785
    %v870 = vpack.c.b16 %v855, %v854
    %v871 = vpack.c.b16 %v857, %v856
    %v872 = vpack.c.b16 %v859, %v858
    %v873 = vpack.c.b16 %v861, %v860
    %v874 = vpack.c.b16 %v863, %v862
    %v875 = vpack.c.b16 %v865, %v864
    %v876 = vpack.c.b16 %v867, %v866
    %v877 = vpack.c.b16 %v869, %v868
    %v902 = vunpack.c.l.b16 %v818
    %v903 = vunpack.c.l.b16 %v819
    %v904 = vunpack.c.l.b16 %v820
    %v905 = vunpack.c.l.b16 %v821
    %v906 = vunpack.c.l.b16 %v822
    %v907 = vunpack.c.l.b16 %v823
    %v908 = vunpack.c.l.b16 %v824
    %v909 = vunpack.c.l.b16 %v825
    %v910 = vunpack.c.l.b16 %v826
    %v911 = vunpack.c.l.b16 %v827
    %v912 = vunpack.c.l.b16 %v828
    %v913 = vunpack.c.l.b16 %v829
    %v914 = vunpack.c.l.b16 %v830
    %v915 = vunpack.c.l.b16 %v831
    %v916 = vunpack.c.l.b16 %v832
    %v917 = vunpack.c.l.b16 %v833
    %v918 = vpack.c.b16 %v903, %v902
    %v919 = vpack.c.b16 %v905, %v904
    %v920 = vpack.c.b16 %v907, %v906
    %v921 = vpack.c.b16 %v909, %v908
    %v922 = vpack.c.b16 %v911, %v910
    %v923 = vpack.c.b16 %v913, %v912
    %v924 = vpack.c.b16 %v915, %v914
    %v925 = vpack.c.b16 %v917, %v916
    %934 = vmatpush.bf16.msra.mxu0 %v925
    %935 = vmatpush.bf16.msra.mxu0 %v924
    %936 = vmatpush.bf16.msra.mxu0 %v923
    %937 = vmatpush.bf16.msra.mxu0 %v922
    %938 = vmatpush.bf16.msra.mxu0 %v921
    %939 = vmatpush.bf16.msra.mxu0 %v920
    %940 = vmatpush.bf16.msra.mxu0 %v919
    %941 = vmatpush.bf16.msra.mxu0 %v918
    %942 = vmatmul.bf16.gmra.mxu0 %v870
    %v943 = vpop.f32.mrf.mxu0
    %v944 = vadd.f32 %v836, %v943
    %v945 = vpop.f32.mrf.mxu0
    %v946 = vadd.f32 %v836, %v945
    %947 = vmatmul.bf16.gmra.mxu0 %v871
    %v948 = vpop.f32.mrf.mxu0
    %v949 = vadd.f32 %v836, %v948
    %v950 = vpop.f32.mrf.mxu0
    %v951 = vadd.f32 %v836, %v950
    %952 = vmatmul.bf16.gmra.mxu0 %v872
    %v953 = vpop.f32.mrf.mxu0
    %v954 = vadd.f32 %v836, %v953
    %v955 = vpop.f32.mrf.mxu0
    %v956 = vadd.f32 %v836, %v955
    %957 = vmatmul.bf16.gmra.mxu0 %v873
    %v958 = vpop.f32.mrf.mxu0
    %v959 = vadd.f32 %v836, %v958
    %v960 = vpop.f32.mrf.mxu0
    %v961 = vadd.f32 %v836, %v960
    %962 = vmatmul.bf16.gmra.mxu0 %v874
    %v963 = vpop.f32.mrf.mxu0
    %v964 = vadd.f32 %v836, %v963
    %v965 = vpop.f32.mrf.mxu0
    %v966 = vadd.f32 %v836, %v965
    %967 = vmatmul.bf16.gmra.mxu0 %v875
    %v968 = vpop.f32.mrf.mxu0
    %v969 = vadd.f32 %v836, %v968
    %v970 = vpop.f32.mrf.mxu0
    %v971 = vadd.f32 %v836, %v970
    %972 = vmatmul.bf16.gmra.mxu0 %v876
    %v973 = vpop.f32.mrf.mxu0
    %v974 = vadd.f32 %v836, %v973
    %v975 = vpop.f32.mrf.mxu0
    %v976 = vadd.f32 %v836, %v975
    %977 = vmatmul.bf16.gmra.mxu0 %v877
    %v978 = vpop.f32.mrf.mxu0
    %v979 = vadd.f32 %v836, %v978
    %v980 = vpop.f32.mrf.mxu0
    %v981 = vadd.f32 %v836, %v980
    %982 = vdwg.mxu0
    %983 = vst [vmem:[#allocation11] sm:$0xff] %v944
    %984 = vst [vmem:[#allocation11 + $0x8] sm:$0xff] %v946
    %985 = vst [vmem:[#allocation11 + $0x10] sm:$0xff] %v949
    %986 = vst [vmem:[#allocation11 + $0x18] sm:$0xff] %v951
    %987 = vst [vmem:[#allocation11 + $0x20] sm:$0xff] %v954
    %988 = vst [vmem:[#allocation11 + $0x28] sm:$0xff] %v956
    %989 = vst [vmem:[#allocation11 + $0x30] sm:$0xff] %v959
    %990 = vst [vmem:[#allocation11 + $0x38] sm:$0xff] %v961
    %991 = vst [vmem:[#allocation11 + $0x40] sm:$0xff] %v964
    %992 = vst [vmem:[#allocation11 + $0x48] sm:$0xff] %v966
    %993 = vst [vmem:[#allocation11 + $0x50] sm:$0xff] %v969
    %994 = vst [vmem:[#allocation11 + $0x58] sm:$0xff] %v971
    %995 = vst [vmem:[#allocation11 + $0x60] sm:$0xff] %v974
    %996 = vst [vmem:[#allocation11 + $0x68] sm:$0xff] %v976
    %997 = vst [vmem:[#allocation11 + $0x70] sm:$0xff] %v979
    %998 = vst [vmem:[#allocation11 + $0x78] sm:$0xff] %v981
    // Predicated region
    $region54: #{tpu_custom_call.1} parent=1 // pred_check
      _
    $region55: #{tpu_custom_call.1} parent=1 // pred_check_branch
      %1000 = sbr.rel (0) target = $region57
    $region56: #{tpu_custom_call.1} parent=1 // pred_region
      %1002 = vsyncadd [#allocation4], 0
      %s1003 = sshll.u32 [#allocation11], 4
      %s1004 = int_to_ptr.vmem [resolvable:$true] %s1003
      %s1005 = sshll.u32 %s8, 4
      %s1006 = int_to_ptr.hbm [resolvable:$true] %s1005
      %1011 = dma.vmem_to_hbm [thread:$0]  %s1004, 2048, %s1006, [#allocation4], 128, 128, 8
    $region57: #{tpu_custom_call.1} parent=1 // pred_fallthru
      _
    // Predicated region
    $region58: #{tpu_custom_call.1} parent=1 // pred_check
      _
    $region59: #{tpu_custom_call.1} parent=1 // pred_check_branch
      %1013 = sbr.rel (0) target = $region61
    $region60: #{tpu_custom_call.1} parent=1 // pred_region
      %1015 = vsyncadd [#allocation13], 0
      %s1016 = sshll.u32 [#allocation12], 4
      %s1017 = int_to_ptr.vmem [resolvable:$true] %s1016
      %s1018 = sshll.u32 %s9, 4
      %s1019 = int_to_ptr.hbm [resolvable:$true] %s1018
      %1024 = dma.vmem_to_hbm [thread:$0]  %s1017, 2048, %s1019, [#allocation13], 128, 128, 8
    $region61: #{tpu_custom_call.1} parent=1 // pred_fallthru
      _
    // Predicated region
    $region62: #{tpu_custom_call.1} parent=1 // pred_check
      _
    $region63: #{tpu_custom_call.1} parent=1 // pred_check_branch
      %1026 = sbr.rel (0) target = $region65
    $region64: #{tpu_custom_call.1} parent=1 // pred_region
      %1028 = dma.done [#allocation4], 2048
    $region65: #{tpu_custom_call.1} parent=1 // pred_fallthru
      _
    // Predicated region
    $region66: #{tpu_custom_call.1} parent=1 // pred_check
      _
    $region67: #{tpu_custom_call.1} parent=1 // pred_check_branch
      %1030 = sbr.rel (0) target = $region69
    $region68: #{tpu_custom_call.1} parent=1 // pred_region
      %1032 = dma.done [#allocation13], 2048
    $region69: #{tpu_custom_call.1} parent=1 // pred_fallthru
      _
    %1033 = vsyncpa [#allocation3], 1
    %1034 = vsyncpa [#allocation6], 1
    %1035 = vsyncpa [#allocation9], 1
    %1036 = vsyncpa [#allocation4], 1
    %1037 = vsyncpa [#allocation13], 1

</llo_original>
